<compile_context>
chip_gen: v5e
topology: v5e:2x2
jax: 0.10.0
libtpu: 0.0.40
codegen_flags: <defaults>
</compile_context>

<pallas_src>
import math

import numpy as np
import jax
import jax.numpy as jnp
from jax import lax
from jax.experimental import pallas as pl
from jax.experimental.pallas import tpu as pltpu


def _make_pe_kernel(*, c2: int, c4: int, c_out: int, tW: int, H: int,
                    B: int, flat: bool):
    """Kernel closure; all sizes are compile-time constants."""
    cX = min(c_out, c2)            # emb_x channels kept
    cY = max(0, c_out - c2)        # emb_y channels kept
    neg_two_log1e4_over_c2 = -2.0 * math.log(10000.0) / c2

    def kernel(pos_ref, out_ref):
        # pos_ref: (1, 1, tW) f32 -- absolute W positions of this spatial tile.
        # out_ref: (B, c_out, tW*H) if flat else (B, c_out, tW, H).

        # inv_freq[f] = 1 / 10000 ** (2*f / c2), f in [0, c4)  -> (c4, 1)
        f = lax.broadcasted_iota(jnp.int32, (c4, 1), 0).astype(jnp.float32)
        inv_freq = jnp.exp(f * neg_two_log1e4_over_c2)

        pos_w = pos_ref[0]                                        # (1, tW)
        pos_h = lax.broadcasted_iota(jnp.int32, (c4, H), 1).astype(jnp.float32)

        # Small separable trig tables: only c2*(tW + H) transcendentals.
        ph_x = pos_w * inv_freq                                   # (c4, tW)
        ph_y = pos_h * inv_freq                                   # (c4, H)
        emb_x = jnp.concatenate([jnp.sin(ph_x), jnp.cos(ph_x)], axis=0)  # (c2, tW)
        emb_y = jnp.concatenate([jnp.sin(ph_y), jnp.cos(ph_y)], axis=0)  # (c2, H)

        # Assemble only the channels that are kept.
        vx = jnp.broadcast_to(emb_x[:cX, :, None], (cX, tW, H))
        if flat:
            vx = vx.reshape(cX, tW * H)
        vx = vx.astype(out_ref.dtype)
        if cY > 0:
            vy = jnp.broadcast_to(emb_y[:cY, None, :], (cY, tW, H))
            if flat:
                vy = vy.reshape(cY, tW * H)
            vy = vy.astype(out_ref.dtype)

        # Encoding is identical for every batch index: compute once, write B
        # times (B is folded into the output block -> one grid step per tile).
        for b in range(B):
            out_ref[b, 0:cX] = vx
            if cY > 0:
                out_ref[b, c2:c2 + cY] = vy

    return kernel


def positional_encoding_permute_2d(x, channels: int):
    """Equivalent of PositionalEncodingPermute2D(channels)(x) with x in NCHW."""
    B, C_in, W, H = x.shape
    c2 = int(np.ceil(channels / 2))          # self.channels in the module
    c4 = len(range(0, c2, 2))                # number of frequencies
    # The PyTorch module only works when ceil(channels/2) is even
    # (otherwise emb[:, :, :c2] = emb_x raises a shape error).
    assert 2 * c4 == c2, "PositionalEncoding2D requires ceil(channels/2) to be even"

    # Output channel count matches the module's emb[..., :ori_ch] slice.
    C_out = min(C_in, 2 * c2)
    itemsize = jnp.dtype(x.dtype).itemsize

    # Layout: flatten (W, H) -> W*H only when H is not already lane-dense.
    flat = (H % 128 != 0)
    req = (128 // math.gcd(H, 128)) if flat else 8   # tW alignment for partial tiles

    # --- VMEM budget: 2x block (double-buffered out) + ~3x f32 intermediates ---
    out_row_bytes = B * C_out * H * itemsize
    f32_row_bytes = C_out * max(H, 128) * 4
    per_row_total = 2 * out_row_bytes + 3 * f32_row_bytes
    BUDGET = 36 * 1024 * 1024                        # total-footprint target
    tW = max(1, min(W, BUDGET // max(per_row_total, 1)))

    # v7x megacore: guarantee >= 2 spatial tiles on the "parallel" axis when
    # the output is large enough for it to matter.
    total_out_bytes = B * C_out * W * H * itemsize
    if total_out_bytes > (8 << 20):
        half_aligned = -(-(-(-W // 2)) // req) * req   # ceil(ceil(W/2)/req)*req
        if half_aligned < W:
            tW = min(tW, half_aligned)

    if tW < W:
        tW = max(req, (tW // req) * req)
        if tW >= W:
            tW = W
    S = -(-W // tW)                                   # cdiv over the W axis

    # Absolute W positions, tiled (S, 1, tW) so the last two block dims are
    # always full -> no (8,128) constraint on this tiny input.
    pos_w = jnp.arange(S * tW, dtype=jnp.float32).reshape(S, 1, tW)

    kernel = _make_pe_kernel(c2=c2, c4=c4, c_out=C_out, tW=tW, H=H, B=B, flat=flat)

    if flat:
        out_shape = jax.ShapeDtypeStruct((B, C_out, W * H), x.dtype)
        out_spec = pl.BlockSpec((B, C_out, tW * H), lambda s: (0, 0, s))
    else:
        out_shape = jax.ShapeDtypeStruct((B, C_out, W, H), x.dtype)
        out_spec = pl.BlockSpec((B, C_out, tW, H), lambda s: (0, 0, s, 0))

    cost = pl.CostEstimate(
        flops=int(2 * S * c4 * (tW + H)),
        transcendentals=int(S * (c4 + c2 * (tW + H))),
        bytes_accessed=int(total_out_bytes) + int(pos_w.size * 4),
    )

    out = pl.pallas_call(
        kernel,
        out_shape=out_shape,
        grid=(S,),
        in_specs=[pl.BlockSpec((1, 1, tW), lambda s: (s, 0, 0))],
        out_specs=out_spec,
        compiler_params=pltpu.CompilerParams(
            dimension_semantics=("parallel",),
            vmem_limit_bytes=48 * 1024 * 1024,
        ),
        cost_estimate=cost,
    )(pos_w)

    if flat:
        # NCHW is contiguous over (W, H): this reshape is free.
        out = out.reshape(B, C_out, W, H)
    return out


def _ref_pe_permute_2d(x_np: np.ndarray, channels: int) -> np.ndarray:
    """NumPy port of the PyTorch reference forward pass."""
    b, ch, w, h = x_np.shape
    c2 = int(np.ceil(channels / 2))
    inv_freq = 1.0 / (10000.0 ** (np.arange(0, c2, 2).astype(np.float32) / c2))
    pos_x = np.arange(w, dtype=np.float32)
    pos_y = np.arange(h, dtype=np.float32)
    sin_inp_x = np.einsum("i,j->ij", pos_x, inv_freq)
    sin_inp_y = np.einsum("i,j->ij", pos_y, inv_freq)
    emb_x = np.concatenate([np.sin(sin_inp_x), np.cos(sin_inp_x)], -1)[:, None, :]
    emb_y = np.concatenate([np.sin(sin_inp_y), np.cos(sin_inp_y)], -1)
    emb = np.zeros((w, h, c2 * 2), dtype=x_np.dtype)
    emb[:, :, :c2] = emb_x
    emb[:, :, c2:2 * c2] = emb_y
    enc = np.broadcast_to(emb[None, :, :, :ch], (b, w, h, min(ch, 2 * c2)))
    return np.transpose(enc, (0, 3, 1, 2)).copy()


if __name__ == "__main__":
    key = jax.random.PRNGKey(0)

    # Primary case: NCHW input matching the PyTorch module's (batch, ch, x, y).
    B, C, W, H = 2, 8, 16, 16
    x = jax.random.normal(key, (B, C, W, H), dtype=jnp.float32)
    out = jax.block_until_ready(positional_encoding_permute_2d(x, channels=C))
    ref = _ref_pe_permute_2d(np.asarray(x), C)
    np.testing.assert_allclose(np.asarray(out), ref, rtol=1e-4, atol=1e-4)
    assert out.shape == (B, C, W, H) and out.dtype == x.dtype

    # Non-square spatial / small-channel case (flattened W*H path).
    B2, C2, W2, H2 = 1, 4, 8, 32
    x2 = jax.random.normal(jax.random.PRNGKey(0), (B2, C2, W2, H2), dtype=jnp.float32)
    out2 = jax.block_until_ready(positional_encoding_permute_2d(x2, channels=C2))
    ref2 = _ref_pe_permute_2d(np.asarray(x2), C2)
    np.testing.assert_allclose(np.asarray(out2), ref2, rtol=1e-4, atol=1e-4)
    assert out2.shape == (B2, C2, W2, H2) and out2.dtype == x2.dtype

    # Lane-dense H case (no-flatten path, H % 128 == 0).
    B3, C3, W3, H3 = 2, 4, 8, 128
    x3 = jax.random.normal(jax.random.PRNGKey(0), (B3, C3, W3, H3), dtype=jnp.float32)
    out3 = jax.block_until_ready(positional_encoding_permute_2d(x3, channels=C3))
    ref3 = _ref_pe_permute_2d(np.asarray(x3), C3)
    np.testing.assert_allclose(np.asarray(out3), ref3, rtol=1e-4, atol=1e-4)
    assert out3.shape == (B3, C3, W3, H3) and out3.dtype == x3.dtype

    print("KERNEL_OK")
</pallas_src>

<mosaic_0001>
module attributes {stable_mosaic.version = 11 : i64} {
  func.func @kernel(%arg0: i32, %arg1: memref<1x1x16xf32, #tpu.memory_space<vmem>>, %arg2: memref<2x8x256xf32, #tpu.memory_space<vmem>>) attributes {dimension_semantics = [#tpu.dimension_semantics<parallel>], iteration_bounds = array<i64: 1>, scalar_prefetch = 0 : i64, scratch_operands = 0 : i64, tpu.core_type = #tpu.core_type<tc>, window_params = [{transform_indices = @transform_0, window_bounds = array<i64: 1, 1, 16>}, {transform_indices = @transform_1, window_bounds = array<i64: 2, 8, 256>}]} {
    %0 = tpu.iota {dimensions = array<i32: 0>} : vector<2x1xi32>
    %1 = arith.sitofp %0 : vector<2x1xi32> to vector<2x1xf32>
    %cst = arith.constant -4.60517025 : f32
    %2 = vector.broadcast %cst : f32 to vector<2x1xf32>
    %3 = arith.mulf %1, %2 : vector<2x1xf32>
    %4 = math.exp %3 : vector<2x1xf32>
    %c0 = arith.constant 0 : index
    %c0_0 = arith.constant 0 : index
    %c0_1 = arith.constant 0 : index
    %5 = vector.load %arg1[%c0, %c0_0, %c0_1] : memref<1x1x16xf32, #tpu.memory_space<vmem>>, vector<1x1x16xf32>
    %6 = vector.shape_cast %5 : vector<1x1x16xf32> to vector<1x16xf32>
    %7 = tpu.iota {dimensions = array<i32: 1>} : vector<2x16xi32>
    %8 = arith.sitofp %7 : vector<2x16xi32> to vector<2x16xf32>
    %9 = vector.broadcast %6 : vector<1x16xf32> to vector<2x16xf32>
    %10 = vector.broadcast %4 : vector<2x1xf32> to vector<2x16xf32>
    %11 = arith.mulf %9, %10 : vector<2x16xf32>
    %12 = vector.broadcast %4 : vector<2x1xf32> to vector<2x16xf32>
    %13 = arith.mulf %8, %12 : vector<2x16xf32>
    %14 = math.sin %11 : vector<2x16xf32>
    %15 = math.cos %11 : vector<2x16xf32>
    %16 = tpu.concatenate %14, %15 in 0 : vector<2x16xf32>, vector<2x16xf32> -> vector<4x16xf32>
    %17 = math.sin %13 : vector<2x16xf32>
    %18 = math.cos %13 : vector<2x16xf32>
    %19 = tpu.concatenate %17, %18 in 0 : vector<2x16xf32>, vector<2x16xf32> -> vector<4x16xf32>
    %20 = vector.shape_cast %16 : vector<4x16xf32> to vector<4x16x1xf32>
    %21 = vector.shape_cast %20 : vector<4x16x1xf32> to vector<4x16x1xf32>
    %22 = vector.broadcast %21 : vector<4x16x1xf32> to vector<4x16x16xf32>
    %23 = vector.shape_cast %22 : vector<4x16x16xf32> to vector<4x256xf32>
    %24 = vector.shape_cast %19 : vector<4x16xf32> to vector<4x1x16xf32>
    %25 = vector.shape_cast %24 : vector<4x1x16xf32> to vector<4x1x16xf32>
    %26 = vector.broadcast %25 : vector<4x1x16xf32> to vector<4x16x16xf32>
    %27 = vector.shape_cast %26 : vector<4x16x16xf32> to vector<4x256xf32>
    %c0_2 = arith.constant 0 : index
    %c0_3 = arith.constant 0 : index
    %c0_4 = arith.constant 0 : index
    %28 = vector.load %arg2[%c0_2, %c0_3, %c0_4] : memref<2x8x256xf32, #tpu.memory_space<vmem>>, vector<1x4x256xf32>
    %29 = vector.shape_cast %28 : vector<1x4x256xf32> to vector<4x256xf32>
    %30 = vector.shape_cast %23 : vector<4x256xf32> to vector<1x4x256xf32>
    tpu.vector_store %arg2[%c0_2, %c0_3, %c0_4], %30 {strides = array<i32>} : memref<2x8x256xf32, #tpu.memory_space<vmem>>, vector<1x4x256xf32>,
    %c0_5 = arith.constant 0 : index
    %c4 = arith.constant 4 : index
    %c0_6 = arith.constant 0 : index
    %31 = vector.load %arg2[%c0_5, %c4, %c0_6] : memref<2x8x256xf32, #tpu.memory_space<vmem>>, vector<1x4x256xf32>
    %32 = vector.shape_cast %31 : vector<1x4x256xf32> to vector<4x256xf32>
    %33 = vector.shape_cast %27 : vector<4x256xf32> to vector<1x4x256xf32>
    tpu.vector_store %arg2[%c0_5, %c4, %c0_6], %33 {strides = array<i32>} : memref<2x8x256xf32, #tpu.memory_space<vmem>>, vector<1x4x256xf32>,
    %c1 = arith.constant 1 : index
    %c0_7 = arith.constant 0 : index
    %c0_8 = arith.constant 0 : index
    %34 = vector.load %arg2[%c1, %c0_7, %c0_8] : memref<2x8x256xf32, #tpu.memory_space<vmem>>, vector<1x4x256xf32>
    %35 = vector.shape_cast %34 : vector<1x4x256xf32> to vector<4x256xf32>
    %36 = vector.shape_cast %23 : vector<4x256xf32> to vector<1x4x256xf32>
    tpu.vector_store %arg2[%c1, %c0_7, %c0_8], %36 {strides = array<i32>} : memref<2x8x256xf32, #tpu.memory_space<vmem>>, vector<1x4x256xf32>,
    %c1_9 = arith.constant 1 : index
    %c4_10 = arith.constant 4 : index
    %c0_11 = arith.constant 0 : index
    %37 = vector.load %arg2[%c1_9, %c4_10, %c0_11] : memref<2x8x256xf32, #tpu.memory_space<vmem>>, vector<1x4x256xf32>
    %38 = vector.shape_cast %37 : vector<1x4x256xf32> to vector<4x256xf32>
    %39 = vector.shape_cast %27 : vector<4x256xf32> to vector<1x4x256xf32>
    tpu.vector_store %arg2[%c1_9, %c4_10, %c0_11], %39 {strides = array<i32>} : memref<2x8x256xf32, #tpu.memory_space<vmem>>, vector<1x4x256xf32>,
    return
  }
  func.func @transform_0(%arg0: i32) -> (i32, i32, i32) {
    %c0_i32 = arith.constant 0 : i32
    %c0_i32_0 = arith.constant 0 : i32
    %c0_i32_1 = arith.constant 0 : i32
    return %arg0, %c0_i32, %c0_i32_0 : i32, i32, i32
  }
  func.func @transform_1(%arg0: i32) -> (i32, i32, i32) {
    %c0_i32 = arith.constant 0 : i32
    %c0_i32_0 = arith.constant 0 : i32
    %c0_i32_1 = arith.constant 0 : i32
    return %c0_i32, %c0_i32_0, %arg0 : i32, i32, i32
  }
}

</mosaic_0001>

<llo_original>
// kernel: tpu_custom_call.1
$region0: #{tpu_custom_call.1}
  #allocation0 [shape = 'u32[]', space=smem, size = 0x4, offset = 0x4, fixed_abs, tag = 'smem constant byte address 0x4 - core index']
  #allocation1 [shape = 'u32[72,128]{1,0:T(1,128)}', space=vmem, size = 0x9000, scoped, tag = 'internal scratch']
  %s0 = inlined_call_operand.hbm [shape: f32[1,1,16], index: 0, kind: input, shape index: {}]
  %s1 = inlined_call_operand.hbm [shape: f32[2,8,256], index: 1, kind: output, shape index: {}]
  %s2 = sld [smem:[#allocation0]]
  $region18: #{tpu_custom_call.1} parent=0
    _
  %s4 = ssub.s32 1, %s2
  %s5 = scalar_select 0, %s4, %s2
  $region1: #{tpu_custom_call.1} parent=0
    #allocation2 [shape = 'u8[512]{0}', space=vmem, size = 0x400, scoped, tag = 'input window, operand 0, single buffered']
    #allocation3 [shape = 's32[1]{0}', space=sflag, size = 0x4, scoped, tag = 'scoped memory for tpu_custom_call.1']
    #allocation4 [shape = 's32[1]{0}', space=sflag, size = 0x4, scoped, tag = 'scoped memory for tpu_custom_call.1']
    #allocation5 [shape = 'u8[16384]{0}', space=vmem, size = 0x4000, scoped, tag = 'output window, operand 0, single buffered']
    %6 = vsyncpa [#allocation3], 0
    %7 = vsyncpa [#allocation4], 0
    // Predicated region
    $region2: #{tpu_custom_call.1} parent=1 // pred_check
      _
    $region3: #{tpu_custom_call.1} parent=1 // pred_check_branch
      %9 = sbr.rel (0) target = $region5
    $region4: #{tpu_custom_call.1} parent=1 // pred_region
      %11 = vsyncadd [#allocation3], 0
      %s13 = sshll.u32 %s0, 4
      %s14 = int_to_ptr.hbm [resolvable:$true] %s13
      %s15 = sshll.u32 [#allocation2], 4
      %s16 = int_to_ptr.vmem [resolvable:$true] %s15
      %18 = dma.hbm_to_vmem [thread:$0]  %s14, 16, %s16, [#allocation3]
    $region5: #{tpu_custom_call.1} parent=1 // pred_fallthru
      _
    // Predicated region
    $region6: #{tpu_custom_call.1} parent=1 // pred_check
      _
    $region7: #{tpu_custom_call.1} parent=1 // pred_check_branch
      %20 = sbr.rel (0) target = $region9
    $region8: #{tpu_custom_call.1} parent=1 // pred_region
      %22 = dma.done [#allocation3], 16
    $region9: #{tpu_custom_call.1} parent=1 // pred_fallthru
      _
    %v23 = vlaneseq
    %v24 = vshrl.u32 %v23, 7
    %v25 = vcvt.s32.f32 %v24
    %v26 = vmul.f32 %v25, -4.6051702
    %v27 = vmul.f32 %v26, 1.442695
    %v28 = vpow.pop %v27
    %v29 = vld [vmem:[#allocation2] sm:$0x1]
    %v30 = vlaneseq
    %v31 = vand.u32 %v30, 127
    %v32 = vcvt.s32.f32 %v31
    %v34 = vperm.slane %v29, 0
    %v36 = vmul.f32 %v34, %v28
    %v37 = vmul.f32 %v32, %v28
    %v38 = vand.u32 2147483647, %v36
    %vm39 = vcmp.le.f32.partialorder %v38, 0.7853982
    %vm40 = vcmp.lt.s32.totalorder %v36, 0
    %v41 = vand.u32 %v36, 2139095040
    %v42 = vshrl.u32 %v41, 23
    %v43 = vsub.s32 %v42, 127
    %v44 = vand.u32 2147483647, %v36
    %v45 = vand.u32 %v44, 8388607
    %v46 = vor.u32 %v45, 8388608
    %v47 = vsub.s32 0, %v46
    %v48 = vadd.s32 %v43, 1
    %vm49 = vcmp.gt.s32.totalorder %v48, 0
    %v50 = vsel %vm49, %v48, 0
    %v51 = vshrl.u32 %v50, 5
    %v52 = vand.u32 %v50, 31
    %v53 = vsub.s32 32, %v52
    %v54 = vshrl.u32 683565275, %v53
    %v55 = vshll.u32 683565275, %v52
    %v56 = vshrl.u32 2475754826, %v53
    %v57 = vor.u32 %v55, %v56
    %v58 = vshll.u32 2475754826, %v52
    %v59 = vshrl.u32 2131351028, %v53
    %v60 = vor.u32 %v58, %v59
    %v61 = vshll.u32 2131351028, %v52
    %v62 = vshrl.u32 2102212464, %v53
    %v63 = vor.u32 %v61, %v62
    %v64 = vshll.u32 2102212464, %v52
    %v65 = vshrl.u32 920167782, %v53
    %v66 = vor.u32 %v64, %v65
    %v67 = vshll.u32 920167782, %v52
    %v68 = vshrl.u32 1326507024, %v53
    %v69 = vor.u32 %v67, %v68
    %vm70 = vcmp.lt.s32.totalorder %v51, 1
    %vm71 = vcmp.lt.s32.totalorder %v51, 2
    %vm72 = vcmp.lt.s32.totalorder %v51, 3
    %vm73 = vcmp.lt.s32.totalorder %v51, 4
    %v74 = vsel %vm70, %v54, %v57
    %v75 = vsel %vm73, %v63, 2102212464
    %v76 = vsel %vm72, %v60, %v75
    %v77 = vsel %vm71, %v74, %v76
    %v78 = vsel %vm70, %v57, %v60
    %v79 = vsel %vm73, %v66, 920167782
    %v80 = vsel %vm72, %v63, %v79
    %v81 = vsel %vm71, %v78, %v80
    %v82 = vsel %vm70, %v60, %v63
    %v83 = vsel %vm73, %v69, 1326507024
    %v84 = vsel %vm72, %v66, %v83
    %v85 = vsel %vm71, %v82, %v84
    %v86 = vshll.u32 %v46, 8
    %v87 = vand.u32 %v86, 65535
    %v88 = vshrl.u32 %v86, 16
    %v89 = vand.u32 %v85, 65535
    %v90 = vshrl.u32 %v85, 16
    %v91 = vmul.u32 %v87, %v89
    %v92 = vmul.u32 %v87, %v90
    %v93 = vmul.u32 %v88, %v89
    %v94 = vmul.u32 %v88, %v90
    %v95 = vshll.u32 %v92, 16
    %v96 = vshrl.u32 %v92, 16
    %v97 = vshll.u32 %v93, 16
    %v98 = vshrl.u32 %v93, 16
    %vm99 = vc.u32 %v91, %v95
    %v100 = vsel %vm99, 1, 0
    %v101 = vadd.s32 %v91, %v95
    %v102 = vadd.s32 %v94, %v100
    %vm103 = vc.u32 %v101, %v97
    %v104 = vsel %vm103, 1, 0
    %v105 = vadd.s32 %v101, %v97
    %v106 = vadd.s32 %v102, %v104
    %v107 = vadd.s32 %v106, %v96
    %v108 = vadd.s32 %v107, %v98
    %v109 = vand.u32 %v86, 65535
    %v110 = vshrl.u32 %v86, 16
    %v111 = vand.u32 %v81, 65535
    %v112 = vshrl.u32 %v81, 16
    %v113 = vmul.u32 %v109, %v111
    %v114 = vmul.u32 %v109, %v112
    %v115 = vmul.u32 %v110, %v111
    %v116 = vmul.u32 %v110, %v112
    %v117 = vshll.u32 %v114, 16
    %v118 = vshrl.u32 %v114, 16
    %v119 = vshll.u32 %v115, 16
    %v120 = vshrl.u32 %v115, 16
    %vm121 = vc.u32 %v113, %v117
    %v122 = vsel %vm121, 1, 0
    %v123 = vadd.s32 %v113, %v117
    %v124 = vadd.s32 %v116, %v122
    %vm125 = vc.u32 %v123, %v119
    %v126 = vsel %vm125, 1, 0
    %v127 = vadd.s32 %v123, %v119
    %v128 = vadd.s32 %v124, %v126
    %v129 = vadd.s32 %v128, %v118
    %v130 = vadd.s32 %v129, %v120
    %v131 = vmul.u32 %v86, %v77
    %v132 = vadd.s32 %v108, %v127
    %vm133 = vc.u32 %v108, %v127
    %v134 = vadd.s32 %v130, 1
    %v135 = vsel %vm133, %v134, %v130
    %v136 = vadd.s32 %v131, %v135
    %v137 = vadd.s32 %v136, 536870912
    %v138 = vshrl.u32 %v137, 30
    %v139 = vshll.u32 %v138, 30
    %v140 = vsub.s32 %v136, %v139
    %vm141 = vcmp.lt.s32.totalorder %v140, 0
    %v142 = vsub.s32 0, %v140
    %v143 = vsel %vm141, %v142, %v140
    %v144 = vclz %v143
    %v145 = vsub.s32 %v144, 2
    %vm146 = vcmp.gt.s32.totalorder 0, %v145
    %v147 = vsel %vm146, 0, %v145
    %v148 = vsub.s32 32, %v147
    %v149 = vshll.u32 %v140, %v147
    %v150 = vshrl.u32 %v132, %v148
    %v151 = vor.u32 %v149, %v150
    %v152 = vsub.s32 4294967266, %v147
    %v153 = vadd.s32 %v152, 127
    %v154 = vshll.u32 %v153, 23
    %v155 = vor.u32 4788187, %v154
    %v156 = vand.u32 2147483647, %v155
    %v158 = vcvt.s32.f32 %v151
    %v159 = vmul.f32 %v158, %v156
    %v160 = vxor.u32 %v159, 2147483648
    %v161 = vsel %vm40, %v160, %v159
    %v162 = vsub.s32 4, %v138
    %v163 = vsel %vm40, %v162, %v138
    %v164 = vsel %vm39, %v36, %v161
    %v165 = vsel %vm39, 0, %v163
    %v166 = vmul.f32 %v164, %v164
    %v167 = vmul.f32 %v166, -0.001358992
    %v168 = vadd.f32 %v167, 0.041655596
    %v169 = vmul.f32 %v166, %v168
    %v170 = vadd.f32 %v169, -0.4999988
    %v171 = vmul.f32 %v166, %v170
    %v172 = vadd.f32 1.0, %v171
    %v173 = vmul.f32 %v164, %v164
    %v174 = vmul.f32 %v173, -0.00019511016
    %v175 = vadd.f32 %v174, 0.008332121
    %v176 = vmul.f32 %v173, %v175
    %v177 = vadd.f32 %v176, -0.16666654
    %v178 = vmul.f32 %v173, %v177
    %v179 = vadd.f32 %v178, 1.0
    %v180 = vmul.f32 %v179, %v164
    %vm181 = vweird.f32 %v36
    %v182 = vadd.s32 %v165, 3
    %v183 = vand.u32 %v182, 3
    %vm184 = vcmp.lt.s32.totalorder %v183, 2
    %vm185 = vcmp.eq.s32.totalorder %v183, 0
    %v186 = vxor.u32 %v180, 2147483648
    %v187 = vsel %vm185, %v172, %v186
    %vm188 = vcmp.eq.s32.totalorder %v183, 2
    %v189 = vxor.u32 %v172, 2147483648
    %v190 = vsel %vm188, %v189, %v180
    %v191 = vsel %vm184, %v187, %v190
    %v192 = vsel %vm181, nan, %v191
    %v193 = vand.u32 2147483647, %v36
    %vm194 = vcmp.le.f32.partialorder %v193, 0.7853982
    %vm195 = vcmp.lt.s32.totalorder %v36, 0
    %v196 = vand.u32 %v36, 2139095040
    %v197 = vshrl.u32 %v196, 23
    %v198 = vsub.s32 %v197, 127
    %v199 = vand.u32 2147483647, %v36
    %v200 = vand.u32 %v199, 8388607
    %v201 = vor.u32 %v200, 8388608
    %v202 = vsub.s32 0, %v201
    %v203 = vadd.s32 %v198, 1
    %vm204 = vcmp.gt.s32.totalorder %v203, 0
    %v205 = vsel %vm204, %v203, 0
    %v206 = vshrl.u32 %v205, 5
    %v207 = vand.u32 %v205, 31
    %v208 = vsub.s32 32, %v207
    %v209 = vshrl.u32 683565275, %v208
    %v210 = vshll.u32 683565275, %v207
    %v211 = vshrl.u32 2475754826, %v208
    %v212 = vor.u32 %v210, %v211
    %v213 = vshll.u32 2475754826, %v207
    %v214 = vshrl.u32 2131351028, %v208
    %v215 = vor.u32 %v213, %v214
    %v216 = vshll.u32 2131351028, %v207
    %v217 = vshrl.u32 2102212464, %v208
    %v218 = vor.u32 %v216, %v217
    %v219 = vshll.u32 2102212464, %v207
    %v220 = vshrl.u32 920167782, %v208
    %v221 = vor.u32 %v219, %v220
    %v222 = vshll.u32 920167782, %v207
    %v223 = vshrl.u32 1326507024, %v208
    %v224 = vor.u32 %v222, %v223
    %vm225 = vcmp.lt.s32.totalorder %v206, 1
    %vm226 = vcmp.lt.s32.totalorder %v206, 2
    %vm227 = vcmp.lt.s32.totalorder %v206, 3
    %vm228 = vcmp.lt.s32.totalorder %v206, 4
    %v229 = vsel %vm225, %v209, %v212
    %v230 = vsel %vm228, %v218, 2102212464
    %v231 = vsel %vm227, %v215, %v230
    %v232 = vsel %vm226, %v229, %v231
    %v233 = vsel %vm225, %v212, %v215
    %v234 = vsel %vm228, %v221, 920167782
    %v235 = vsel %vm227, %v218, %v234
    %v236 = vsel %vm226, %v233, %v235
    %v237 = vsel %vm225, %v215, %v218
    %v238 = vsel %vm228, %v224, 1326507024
    %v239 = vsel %vm227, %v221, %v238
    %v240 = vsel %vm226, %v237, %v239
    %v241 = vshll.u32 %v201, 8
    %v242 = vand.u32 %v241, 65535
    %v243 = vshrl.u32 %v241, 16
    %v244 = vand.u32 %v240, 65535
    %v245 = vshrl.u32 %v240, 16
    %v246 = vmul.u32 %v242, %v244
    %v247 = vmul.u32 %v242, %v245
    %v248 = vmul.u32 %v243, %v244
    %v249 = vmul.u32 %v243, %v245
    %v250 = vshll.u32 %v247, 16
    %v251 = vshrl.u32 %v247, 16
    %v252 = vshll.u32 %v248, 16
    %v253 = vshrl.u32 %v248, 16
    %vm254 = vc.u32 %v246, %v250
    %v255 = vsel %vm254, 1, 0
    %v256 = vadd.s32 %v246, %v250
    %v257 = vadd.s32 %v249, %v255
    %vm258 = vc.u32 %v256, %v252
    %v259 = vsel %vm258, 1, 0
    %v260 = vadd.s32 %v256, %v252
    %v261 = vadd.s32 %v257, %v259
    %v262 = vadd.s32 %v261, %v251
    %v263 = vadd.s32 %v262, %v253
    %v264 = vand.u32 %v241, 65535
    %v265 = vshrl.u32 %v241, 16
    %v266 = vand.u32 %v236, 65535
    %v267 = vshrl.u32 %v236, 16
    %v268 = vmul.u32 %v264, %v266
    %v269 = vmul.u32 %v264, %v267
    %v270 = vmul.u32 %v265, %v266
    %v271 = vmul.u32 %v265, %v267
    %v272 = vshll.u32 %v269, 16
    %v273 = vshrl.u32 %v269, 16
    %v274 = vshll.u32 %v270, 16
    %v275 = vshrl.u32 %v270, 16
    %vm276 = vc.u32 %v268, %v272
    %v277 = vsel %vm276, 1, 0
    %v278 = vadd.s32 %v268, %v272
    %v279 = vadd.s32 %v271, %v277
    %vm280 = vc.u32 %v278, %v274
    %v281 = vsel %vm280, 1, 0
    %v282 = vadd.s32 %v278, %v274
    %v283 = vadd.s32 %v279, %v281
    %v284 = vadd.s32 %v283, %v273
    %v285 = vadd.s32 %v284, %v275
    %v286 = vmul.u32 %v241, %v232
    %v287 = vadd.s32 %v263, %v282
    %vm288 = vc.u32 %v263, %v282
    %v289 = vadd.s32 %v285, 1
    %v290 = vsel %vm288, %v289, %v285
    %v291 = vadd.s32 %v286, %v290
    %v292 = vadd.s32 %v291, 536870912
    %v293 = vshrl.u32 %v292, 30
    %v294 = vshll.u32 %v293, 30
    %v295 = vsub.s32 %v291, %v294
    %vm296 = vcmp.lt.s32.totalorder %v295, 0
    %v297 = vsub.s32 0, %v295
    %v298 = vsel %vm296, %v297, %v295
    %v299 = vclz %v298
    %v300 = vsub.s32 %v299, 2
    %vm301 = vcmp.gt.s32.totalorder 0, %v300
    %v302 = vsel %vm301, 0, %v300
    %v303 = vsub.s32 32, %v302
    %v304 = vshll.u32 %v295, %v302
    %v305 = vshrl.u32 %v287, %v303
    %v306 = vor.u32 %v304, %v305
    %v307 = vsub.s32 4294967266, %v302
    %v308 = vadd.s32 %v307, 127
    %v309 = vshll.u32 %v308, 23
    %v310 = vor.u32 4788187, %v309
    %v311 = vand.u32 2147483647, %v310
    %v313 = vcvt.s32.f32 %v306
    %v314 = vmul.f32 %v313, %v311
    %v315 = vxor.u32 %v314, 2147483648
    %v316 = vsel %vm195, %v315, %v314
    %v317 = vsub.s32 4, %v293
    %v318 = vsel %vm195, %v317, %v293
    %v319 = vsel %vm194, %v36, %v316
    %v320 = vsel %vm194, 0, %v318
    %v321 = vmul.f32 %v319, %v319
    %v322 = vmul.f32 %v321, -0.001358992
    %v323 = vadd.f32 %v322, 0.041655596
    %v324 = vmul.f32 %v321, %v323
    %v325 = vadd.f32 %v324, -0.4999988
    %v326 = vmul.f32 %v321, %v325
    %v327 = vadd.f32 1.0, %v326
    %v328 = vmul.f32 %v319, %v319
    %v329 = vmul.f32 %v328, -0.00019511016
    %v330 = vadd.f32 %v329, 0.008332121
    %v331 = vmul.f32 %v328, %v330
    %v332 = vadd.f32 %v331, -0.16666654
    %v333 = vmul.f32 %v328, %v332
    %v334 = vadd.f32 %v333, 1.0
    %v335 = vmul.f32 %v334, %v319
    %vm336 = vweird.f32 %v36
    %v337 = vand.u32 %v320, 3
    %vm338 = vcmp.lt.s32.totalorder %v337, 2
    %vm339 = vcmp.eq.s32.totalorder %v337, 0
    %v340 = vxor.u32 %v335, 2147483648
    %v341 = vsel %vm339, %v327, %v340
    %vm342 = vcmp.eq.s32.totalorder %v337, 2
    %v343 = vxor.u32 %v327, 2147483648
    %v344 = vsel %vm342, %v343, %v335
    %v345 = vsel %vm338, %v341, %v344
    %v346 = vsel %vm336, nan, %v345
    %v348 = vrot.slane %v346, 6
    %vm350 = vcmask 1041408
    %v351 = vsel %vm350, %v192, %v348
    %v352 = vand.u32 2147483647, %v37
    %vm353 = vcmp.le.f32.partialorder %v352, 0.7853982
    %vm354 = vcmp.lt.s32.totalorder %v37, 0
    %v355 = vand.u32 %v37, 2139095040
    %v356 = vshrl.u32 %v355, 23
    %v357 = vsub.s32 %v356, 127
    %v358 = vand.u32 2147483647, %v37
    %v359 = vand.u32 %v358, 8388607
    %v360 = vor.u32 %v359, 8388608
    %v361 = vsub.s32 0, %v360
    %v362 = vadd.s32 %v357, 1
    %vm363 = vcmp.gt.s32.totalorder %v362, 0
    %v364 = vsel %vm363, %v362, 0
    %v365 = vshrl.u32 %v364, 5
    %v366 = vand.u32 %v364, 31
    %v367 = vsub.s32 32, %v366
    %v368 = vshrl.u32 683565275, %v367
    %v369 = vshll.u32 683565275, %v366
    %v370 = vshrl.u32 2475754826, %v367
    %v371 = vor.u32 %v369, %v370
    %v372 = vshll.u32 2475754826, %v366
    %v373 = vshrl.u32 2131351028, %v367
    %v374 = vor.u32 %v372, %v373
    %v375 = vshll.u32 2131351028, %v366
    %v376 = vshrl.u32 2102212464, %v367
    %v377 = vor.u32 %v375, %v376
    %v378 = vshll.u32 2102212464, %v366
    %v379 = vshrl.u32 920167782, %v367
    %v380 = vor.u32 %v378, %v379
    %v381 = vshll.u32 920167782, %v366
    %v382 = vshrl.u32 1326507024, %v367
    %v383 = vor.u32 %v381, %v382
    %vm384 = vcmp.lt.s32.totalorder %v365, 1
    %vm385 = vcmp.lt.s32.totalorder %v365, 2
    %vm386 = vcmp.lt.s32.totalorder %v365, 3
    %vm387 = vcmp.lt.s32.totalorder %v365, 4
    %v388 = vsel %vm384, %v368, %v371
    %v389 = vsel %vm387, %v377, 2102212464
    %v390 = vsel %vm386, %v374, %v389
    %v391 = vsel %vm385, %v388, %v390
    %v392 = vsel %vm384, %v371, %v374
    %v393 = vsel %vm387, %v380, 920167782
    %v394 = vsel %vm386, %v377, %v393
    %v395 = vsel %vm385, %v392, %v394
    %v396 = vsel %vm384, %v374, %v377
    %v397 = vsel %vm387, %v383, 1326507024
    %v398 = vsel %vm386, %v380, %v397
    %v399 = vsel %vm385, %v396, %v398
    %v400 = vshll.u32 %v360, 8
    %v401 = vand.u32 %v400, 65535
    %v402 = vshrl.u32 %v400, 16
    %v403 = vand.u32 %v399, 65535
    %v404 = vshrl.u32 %v399, 16
    %v405 = vmul.u32 %v401, %v403
    %v406 = vmul.u32 %v401, %v404
    %v407 = vmul.u32 %v402, %v403
    %v408 = vmul.u32 %v402, %v404
    %v409 = vshll.u32 %v406, 16
    %v410 = vshrl.u32 %v406, 16
    %v411 = vshll.u32 %v407, 16
    %v412 = vshrl.u32 %v407, 16
    %vm413 = vc.u32 %v405, %v409
    %v414 = vsel %vm413, 1, 0
    %v415 = vadd.s32 %v405, %v409
    %v416 = vadd.s32 %v408, %v414
    %vm417 = vc.u32 %v415, %v411
    %v418 = vsel %vm417, 1, 0
    %v419 = vadd.s32 %v415, %v411
    %v420 = vadd.s32 %v416, %v418
    %v421 = vadd.s32 %v420, %v410
    %v422 = vadd.s32 %v421, %v412
    %v423 = vand.u32 %v400, 65535
    %v424 = vshrl.u32 %v400, 16
    %v425 = vand.u32 %v395, 65535
    %v426 = vshrl.u32 %v395, 16
    %v427 = vmul.u32 %v423, %v425
    %v428 = vmul.u32 %v423, %v426
    %v429 = vmul.u32 %v424, %v425
    %v430 = vmul.u32 %v424, %v426
    %v431 = vshll.u32 %v428, 16
    %v432 = vshrl.u32 %v428, 16
    %v433 = vshll.u32 %v429, 16
    %v434 = vshrl.u32 %v429, 16
    %vm435 = vc.u32 %v427, %v431
    %v436 = vsel %vm435, 1, 0
    %v437 = vadd.s32 %v427, %v431
    %v438 = vadd.s32 %v430, %v436
    %vm439 = vc.u32 %v437, %v433
    %v440 = vsel %vm439, 1, 0
    %v441 = vadd.s32 %v437, %v433
    %v442 = vadd.s32 %v438, %v440
    %v443 = vadd.s32 %v442, %v432
    %v444 = vadd.s32 %v443, %v434
    %v445 = vmul.u32 %v400, %v391
    %v446 = vadd.s32 %v422, %v441
    %vm447 = vc.u32 %v422, %v441
    %v448 = vadd.s32 %v444, 1
    %v449 = vsel %vm447, %v448, %v444
    %v450 = vadd.s32 %v445, %v449
    %v451 = vadd.s32 %v450, 536870912
    %v452 = vshrl.u32 %v451, 30
    %v453 = vshll.u32 %v452, 30
    %v454 = vsub.s32 %v450, %v453
    %vm455 = vcmp.lt.s32.totalorder %v454, 0
    %v456 = vsub.s32 0, %v454
    %v457 = vsel %vm455, %v456, %v454
    %v458 = vclz %v457
    %v459 = vsub.s32 %v458, 2
    %vm460 = vcmp.gt.s32.totalorder 0, %v459
    %v461 = vsel %vm460, 0, %v459
    %v462 = vsub.s32 32, %v461
    %v463 = vshll.u32 %v454, %v461
    %v464 = vshrl.u32 %v446, %v462
    %v465 = vor.u32 %v463, %v464
    %v466 = vsub.s32 4294967266, %v461
    %v467 = vadd.s32 %v466, 127
    %v468 = vshll.u32 %v467, 23
    %v469 = vor.u32 4788187, %v468
    %v470 = vand.u32 2147483647, %v469
    %v472 = vcvt.s32.f32 %v465
    %v473 = vmul.f32 %v472, %v470
    %v474 = vxor.u32 %v473, 2147483648
    %v475 = vsel %vm354, %v474, %v473
    %v476 = vsub.s32 4, %v452
    %v477 = vsel %vm354, %v476, %v452
    %v478 = vsel %vm353, %v37, %v475
    %v479 = vsel %vm353, 0, %v477
    %v480 = vmul.f32 %v478, %v478
    %v481 = vmul.f32 %v480, -0.001358992
    %v482 = vadd.f32 %v481, 0.041655596
    %v483 = vmul.f32 %v480, %v482
    %v484 = vadd.f32 %v483, -0.4999988
    %v485 = vmul.f32 %v480, %v484
    %v486 = vadd.f32 1.0, %v485
    %v487 = vmul.f32 %v478, %v478
    %v488 = vmul.f32 %v487, -0.00019511016
    %v489 = vadd.f32 %v488, 0.008332121
    %v490 = vmul.f32 %v487, %v489
    %v491 = vadd.f32 %v490, -0.16666654
    %v492 = vmul.f32 %v487, %v491
    %v493 = vadd.f32 %v492, 1.0
    %v494 = vmul.f32 %v493, %v478
    %vm495 = vweird.f32 %v37
    %v496 = vadd.s32 %v479, 3
    %v497 = vand.u32 %v496, 3
    %vm498 = vcmp.lt.s32.totalorder %v497, 2
    %vm499 = vcmp.eq.s32.totalorder %v497, 0
    %v500 = vxor.u32 %v494, 2147483648
    %v501 = vsel %vm499, %v486, %v500
    %vm502 = vcmp.eq.s32.totalorder %v497, 2
    %v503 = vxor.u32 %v486, 2147483648
    %v504 = vsel %vm502, %v503, %v494
    %v505 = vsel %vm498, %v501, %v504
    %v506 = vsel %vm495, nan, %v505
    %v507 = vand.u32 2147483647, %v37
    %vm508 = vcmp.le.f32.partialorder %v507, 0.7853982
    %vm509 = vcmp.lt.s32.totalorder %v37, 0
    %v510 = vand.u32 %v37, 2139095040
    %v511 = vshrl.u32 %v510, 23
    %v512 = vsub.s32 %v511, 127
    %v513 = vand.u32 2147483647, %v37
    %v514 = vand.u32 %v513, 8388607
    %v515 = vor.u32 %v514, 8388608
    %v516 = vsub.s32 0, %v515
    %v517 = vadd.s32 %v512, 1
    %vm518 = vcmp.gt.s32.totalorder %v517, 0
    %v519 = vsel %vm518, %v517, 0
    %v520 = vshrl.u32 %v519, 5
    %v521 = vand.u32 %v519, 31
    %v522 = vsub.s32 32, %v521
    %v523 = vshrl.u32 683565275, %v522
    %v524 = vshll.u32 683565275, %v521
    %v525 = vshrl.u32 2475754826, %v522
    %v526 = vor.u32 %v524, %v525
    %v527 = vshll.u32 2475754826, %v521
    %v528 = vshrl.u32 2131351028, %v522
    %v529 = vor.u32 %v527, %v528
    %v530 = vshll.u32 2131351028, %v521
    %v531 = vshrl.u32 2102212464, %v522
    %v532 = vor.u32 %v530, %v531
    %v533 = vshll.u32 2102212464, %v521
    %v534 = vshrl.u32 920167782, %v522
    %v535 = vor.u32 %v533, %v534
    %v536 = vshll.u32 920167782, %v521
    %v537 = vshrl.u32 1326507024, %v522
    %v538 = vor.u32 %v536, %v537
    %vm539 = vcmp.lt.s32.totalorder %v520, 1
    %vm540 = vcmp.lt.s32.totalorder %v520, 2
    %vm541 = vcmp.lt.s32.totalorder %v520, 3
    %vm542 = vcmp.lt.s32.totalorder %v520, 4
    %v543 = vsel %vm539, %v523, %v526
    %v544 = vsel %vm542, %v532, 2102212464
    %v545 = vsel %vm541, %v529, %v544
    %v546 = vsel %vm540, %v543, %v545
    %v547 = vsel %vm539, %v526, %v529
    %v548 = vsel %vm542, %v535, 920167782
    %v549 = vsel %vm541, %v532, %v548
    %v550 = vsel %vm540, %v547, %v549
    %v551 = vsel %vm539, %v529, %v532
    %v552 = vsel %vm542, %v538, 1326507024
    %v553 = vsel %vm541, %v535, %v552
    %v554 = vsel %vm540, %v551, %v553
    %v555 = vshll.u32 %v515, 8
    %v556 = vand.u32 %v555, 65535
    %v557 = vshrl.u32 %v555, 16
    %v558 = vand.u32 %v554, 65535
    %v559 = vshrl.u32 %v554, 16
    %v560 = vmul.u32 %v556, %v558
    %v561 = vmul.u32 %v556, %v559
    %v562 = vmul.u32 %v557, %v558
    %v563 = vmul.u32 %v557, %v559
    %v564 = vshll.u32 %v561, 16
    %v565 = vshrl.u32 %v561, 16
    %v566 = vshll.u32 %v562, 16
    %v567 = vshrl.u32 %v562, 16
    %vm568 = vc.u32 %v560, %v564
    %v569 = vsel %vm568, 1, 0
    %v570 = vadd.s32 %v560, %v564
    %v571 = vadd.s32 %v563, %v569
    %vm572 = vc.u32 %v570, %v566
    %v573 = vsel %vm572, 1, 0
    %v574 = vadd.s32 %v570, %v566
    %v575 = vadd.s32 %v571, %v573
    %v576 = vadd.s32 %v575, %v565
    %v577 = vadd.s32 %v576, %v567
    %v578 = vand.u32 %v555, 65535
    %v579 = vshrl.u32 %v555, 16
    %v580 = vand.u32 %v550, 65535
    %v581 = vshrl.u32 %v550, 16
    %v582 = vmul.u32 %v578, %v580
    %v583 = vmul.u32 %v578, %v581
    %v584 = vmul.u32 %v579, %v580
    %v585 = vmul.u32 %v579, %v581
    %v586 = vshll.u32 %v583, 16
    %v587 = vshrl.u32 %v583, 16
    %v588 = vshll.u32 %v584, 16
    %v589 = vshrl.u32 %v584, 16
    %vm590 = vc.u32 %v582, %v586
    %v591 = vsel %vm590, 1, 0
    %v592 = vadd.s32 %v582, %v586
    %v593 = vadd.s32 %v585, %v591
    %vm594 = vc.u32 %v592, %v588
    %v595 = vsel %vm594, 1, 0
    %v596 = vadd.s32 %v592, %v588
    %v597 = vadd.s32 %v593, %v595
    %v598 = vadd.s32 %v597, %v587
    %v599 = vadd.s32 %v598, %v589
    %v600 = vmul.u32 %v555, %v546
    %v601 = vadd.s32 %v577, %v596
    %vm602 = vc.u32 %v577, %v596
    %v603 = vadd.s32 %v599, 1
    %v604 = vsel %vm602, %v603, %v599
    %v605 = vadd.s32 %v600, %v604
    %v606 = vadd.s32 %v605, 536870912
    %v607 = vshrl.u32 %v606, 30
    %v608 = vshll.u32 %v607, 30
    %v609 = vsub.s32 %v605, %v608
    %vm610 = vcmp.lt.s32.totalorder %v609, 0
    %v611 = vsub.s32 0, %v609
    %v612 = vsel %vm610, %v611, %v609
    %v613 = vclz %v612
    %v614 = vsub.s32 %v613, 2
    %vm615 = vcmp.gt.s32.totalorder 0, %v614
    %v616 = vsel %vm615, 0, %v614
    %v617 = vsub.s32 32, %v616
    %v618 = vshll.u32 %v609, %v616
    %v619 = vshrl.u32 %v601, %v617
    %v620 = vor.u32 %v618, %v619
    %v621 = vsub.s32 4294967266, %v616
    %v622 = vadd.s32 %v621, 127
    %v623 = vshll.u32 %v622, 23
    %v624 = vor.u32 4788187, %v623
    %v625 = vand.u32 2147483647, %v624
    %v627 = vcvt.s32.f32 %v620
    %v628 = vmul.f32 %v627, %v625
    %v629 = vxor.u32 %v628, 2147483648
    %v630 = vsel %vm509, %v629, %v628
    %v631 = vsub.s32 4, %v607
    %v632 = vsel %vm509, %v631, %v607
    %v633 = vsel %vm508, %v37, %v630
    %v634 = vsel %vm508, 0, %v632
    %v635 = vmul.f32 %v633, %v633
    %v636 = vmul.f32 %v635, -0.001358992
    %v637 = vadd.f32 %v636, 0.041655596
    %v638 = vmul.f32 %v635, %v637
    %v639 = vadd.f32 %v638, -0.4999988
    %v640 = vmul.f32 %v635, %v639
    %v641 = vadd.f32 1.0, %v640
    %v642 = vmul.f32 %v633, %v633
    %v643 = vmul.f32 %v642, -0.00019511016
    %v644 = vadd.f32 %v643, 0.008332121
    %v645 = vmul.f32 %v642, %v644
    %v646 = vadd.f32 %v645, -0.16666654
    %v647 = vmul.f32 %v642, %v646
    %v648 = vadd.f32 %v647, 1.0
    %v649 = vmul.f32 %v648, %v633
    %vm650 = vweird.f32 %v37
    %v651 = vand.u32 %v634, 3
    %vm652 = vcmp.lt.s32.totalorder %v651, 2
    %vm653 = vcmp.eq.s32.totalorder %v651, 0
    %v654 = vxor.u32 %v649, 2147483648
    %v655 = vsel %vm653, %v641, %v654
    %vm656 = vcmp.eq.s32.totalorder %v651, 2
    %v657 = vxor.u32 %v641, 2147483648
    %v658 = vsel %vm656, %v657, %v649
    %v659 = vsel %vm652, %v655, %v658
    %v660 = vsel %vm650, nan, %v659
    %v662 = vrot.slane %v660, 6
    %v664 = vsel %vm350, %v506, %v662
    %v665 = vperm.slane %v351, 0
    %v666 = vlaneseq
    %v667 = vshrl.u32 %v666, 7
    %669 = vset.pattern.permute.xlu0 %v667
    %670 = vperm.xlu0 %669, %v665
    %v671 = vpop.permute.xlu0 %670
    %v672 = vlaneseq
    %v673 = vshrl.u32 %v672, 7
    %v674 = vadd.s32 %v673, 8
    %675 = vset.pattern.permute.xlu0 %v674
    %676 = vperm.xlu0 %675, %v665
    %v677 = vpop.permute.xlu0 %676
    %v678 = vperm.slane %v351, 1
    %v679 = vlaneseq
    %v680 = vshrl.u32 %v679, 7
    %682 = vset.pattern.permute.xlu0 %v680
    %683 = vperm.xlu0 %682, %v678
    %v684 = vpop.permute.xlu0 %683
    %v685 = vlaneseq
    %v686 = vshrl.u32 %v685, 7
    %v687 = vadd.s32 %v686, 8
    %688 = vset.pattern.permute.xlu0 %v687
    %689 = vperm.xlu0 %688, %v678
    %v690 = vpop.permute.xlu0 %689
    %v691 = vperm.slane %v351, 2
    %v692 = vlaneseq
    %v693 = vshrl.u32 %v692, 7
    %695 = vset.pattern.permute.xlu0 %v693
    %696 = vperm.xlu0 %695, %v691
    %v697 = vpop.permute.xlu0 %696
    %v698 = vlaneseq
    %v699 = vshrl.u32 %v698, 7
    %v700 = vadd.s32 %v699, 8
    %701 = vset.pattern.permute.xlu0 %v700
    %702 = vperm.xlu0 %701, %v691
    %v703 = vpop.permute.xlu0 %702
    %v704 = vperm.slane %v351, 3
    %v705 = vlaneseq
    %v706 = vshrl.u32 %v705, 7
    %708 = vset.pattern.permute.xlu0 %v706
    %709 = vperm.xlu0 %708, %v704
    %v710 = vpop.permute.xlu0 %709
    %v711 = vlaneseq
    %v712 = vshrl.u32 %v711, 7
    %v713 = vadd.s32 %v712, 8
    %714 = vset.pattern.permute.xlu0 %v713
    %715 = vperm.xlu0 %714, %v704
    %v716 = vpop.permute.xlu0 %715
    %v718 = vrot.slane %v664, 1
    %v719 = vrot.slane %v664, 2
    %v720 = vrot.slane %v664, 3
    %v721 = vperm.slane %v664, 0
    %v722 = vperm.slane %v718, 0
    %v723 = vperm.slane %v719, 0
    %v724 = vperm.slane %v720, 0
    %v729 = vrot.slane %v697, 4
    %vm730 = vcmask 1047556
    %v731 = vsel %vm730, %v729, %v671
    %v732 = vrot.slane %v671, 4
    %v733 = vsel %vm730, %v697, %v732
    %v735 = vunpack.c.l.s4 1983009808
    %v736 = vunpack.c.0.s8 %v735
    %v737 = vperm.slane %v731, %v736
    %v739 = vunpack.c.l.s4 1983009808
    %v740 = vunpack.c.0.s8 %v739
    %v741 = vperm.slane %v733, %v740
    %v742 = vrot.slane %v710, 4
    %v743 = vsel %vm730, %v742, %v684
    %v744 = vrot.slane %v684, 4
    %v745 = vsel %vm730, %v710, %v744
    %v747 = vunpack.c.l.s4 1983009808
    %v748 = vunpack.c.0.s8 %v747
    %v749 = vperm.slane %v743, %v748
    %v751 = vunpack.c.l.s4 1983009808
    %v752 = vunpack.c.0.s8 %v751
    %v753 = vperm.slane %v745, %v752
    %v754 = vrot.slane %v749, 4
    %v755 = vsel %vm730, %v754, %v737
    %v756 = vrot.slane %v737, 4
    %v757 = vsel %vm730, %v749, %v756
    %v759 = vunpack.c.l.s4 1934713408
    %v760 = vunpack.c.0.s8 %v759
    %v761 = vperm.slane %v755, %v760
    %v763 = vunpack.c.l.s4 1934713408
    %v764 = vunpack.c.0.s8 %v763
    %v765 = vperm.slane %v757, %v764
    %v766 = vrot.slane %v753, 4
    %v767 = vsel %vm730, %v766, %v741
    %v768 = vrot.slane %v741, 4
    %v769 = vsel %vm730, %v753, %v768
    %v771 = vunpack.c.l.s4 1934713408
    %v772 = vunpack.c.0.s8 %v771
    %v773 = vperm.slane %v767, %v772
    %v775 = vunpack.c.l.s4 1934713408
    %v776 = vunpack.c.0.s8 %v775
    %v777 = vperm.slane %v769, %v776
    %v778 = vrot.slane %v761, 4
    %v779 = vsel %vm730, 0.0, %v778
    %v780 = vrot.slane %v765, 4
    %v781 = vsel %vm730, 0.0, %v780
    %v782 = vrot.slane %v773, 4
    %v783 = vsel %vm730, 0.0, %v782
    %v784 = vrot.slane %v777, 4
    %v785 = vsel %vm730, 0.0, %v784
    %v786 = vrot.slane %v703, 4
    %v787 = vsel %vm730, %v786, %v677
    %v788 = vrot.slane %v677, 4
    %v789 = vsel %vm730, %v703, %v788
    %v791 = vunpack.c.l.s4 1983009808
    %v792 = vunpack.c.0.s8 %v791
    %v793 = vperm.slane %v787, %v792
    %v795 = vunpack.c.l.s4 1983009808
    %v796 = vunpack.c.0.s8 %v795
    %v797 = vperm.slane %v789, %v796
    %v798 = vrot.slane %v716, 4
    %v799 = vsel %vm730, %v798, %v690
    %v800 = vrot.slane %v690, 4
    %v801 = vsel %vm730, %v716, %v800
    %v803 = vunpack.c.l.s4 1983009808
    %v804 = vunpack.c.0.s8 %v803
    %v805 = vperm.slane %v799, %v804
    %v807 = vunpack.c.l.s4 1983009808
    %v808 = vunpack.c.0.s8 %v807
    %v809 = vperm.slane %v801, %v808
    %v810 = vrot.slane %v805, 4
    %v811 = vsel %vm730, %v810, %v793
    %v812 = vrot.slane %v793, 4
    %v813 = vsel %vm730, %v805, %v812
    %v815 = vunpack.c.l.s4 1934713408
    %v816 = vunpack.c.0.s8 %v815
    %v817 = vperm.slane %v811, %v816
    %v819 = vunpack.c.l.s4 1934713408
    %v820 = vunpack.c.0.s8 %v819
    %v821 = vperm.slane %v813, %v820
    %v822 = vrot.slane %v809, 4
    %v823 = vsel %vm730, %v822, %v797
    %v824 = vrot.slane %v797, 4
    %v825 = vsel %vm730, %v809, %v824
    %v827 = vunpack.c.l.s4 1934713408
    %v828 = vunpack.c.0.s8 %v827
    %v829 = vperm.slane %v823, %v828
    %v831 = vunpack.c.l.s4 1934713408
    %v832 = vunpack.c.0.s8 %v831
    %v833 = vperm.slane %v825, %v832
    %v834 = vrot.slane %v817, 4
    %v835 = vsel %vm730, 0.0, %v834
    %v836 = vrot.slane %v821, 4
    %v837 = vsel %vm730, 0.0, %v836
    %v838 = vrot.slane %v829, 4
    %v839 = vsel %vm730, 0.0, %v838
    %v840 = vrot.slane %v833, 4
    %v841 = vsel %vm730, 0.0, %v840
    %843 = vrot.lane.b32.xlu0 %v779, 16
    %v844 = vpop.permute.xlu0 %843
    %847 = vrot.lane.b32.xlu0 %v765, 32
    %v848 = vpop.permute.xlu0 %847
    %851 = vrot.lane.b32.xlu0 %v781, 48
    %v852 = vpop.permute.xlu0 %851
    %855 = vrot.lane.b32.xlu0 %v773, 64
    %v856 = vpop.permute.xlu0 %855
    %859 = vrot.lane.b32.xlu0 %v783, 80
    %v860 = vpop.permute.xlu0 %859
    %863 = vrot.lane.b32.xlu0 %v777, 96
    %v864 = vpop.permute.xlu0 %863
    %867 = vrot.lane.b32.xlu0 %v785, 112
    %v868 = vpop.permute.xlu0 %867
    %871 = vrot.lane.b32.xlu0 %v835, 16
    %v872 = vpop.permute.xlu0 %871
    %875 = vrot.lane.b32.xlu0 %v821, 32
    %v876 = vpop.permute.xlu0 %875
    %879 = vrot.lane.b32.xlu0 %v837, 48
    %v880 = vpop.permute.xlu0 %879
    %883 = vrot.lane.b32.xlu0 %v829, 64
    %v884 = vpop.permute.xlu0 %883
    %887 = vrot.lane.b32.xlu0 %v839, 80
    %v888 = vpop.permute.xlu0 %887
    %891 = vrot.lane.b32.xlu0 %v833, 96
    %v892 = vpop.permute.xlu0 %891
    %895 = vrot.lane.b32.xlu0 %v841, 112
    %v896 = vpop.permute.xlu0 %895
    %vm898 = vcmask 130048
    %v899 = vsel %vm898, %v761, %v844
    %vm900 = vcmask 261120
    %v901 = vsel %vm900, %v899, %v848
    %vm902 = vcmask 392192
    %v903 = vsel %vm902, %v901, %v852
    %vm904 = vcmask 523264
    %v905 = vsel %vm904, %v903, %v856
    %vm906 = vcmask 654336
    %v907 = vsel %vm906, %v905, %v860
    %vm908 = vcmask 785408
    %v909 = vsel %vm908, %v907, %v864
    %vm910 = vcmask 916480
    %v911 = vsel %vm910, %v909, %v868
    %v912 = vsel %vm898, %v817, %v872
    %v913 = vsel %vm900, %v912, %v876
    %v914 = vsel %vm902, %v913, %v880
    %v915 = vsel %vm904, %v914, %v884
    %v916 = vsel %vm906, %v915, %v888
    %v917 = vsel %vm908, %v916, %v892
    %v918 = vsel %vm910, %v917, %v896
    %919 = vst [vmem:[#allocation5] sm:$0xf] %v911
    %920 = vst [vmem:[#allocation5 + $0x8] sm:$0xf] %v918
    %v921 = vrot.slane %v723, 4
    %v922 = vsel %vm730, %v921, %v721
    %v923 = vrot.slane %v721, 4
    %v924 = vsel %vm730, %v723, %v923
    %v926 = vunpack.c.l.s4 1983009808
    %v927 = vunpack.c.0.s8 %v926
    %v928 = vperm.slane %v922, %v927
    %v930 = vunpack.c.l.s4 1983009808
    %v931 = vunpack.c.0.s8 %v930
    %v932 = vperm.slane %v924, %v931
    %v933 = vrot.slane %v724, 4
    %v934 = vsel %vm730, %v933, %v722
    %v935 = vrot.slane %v722, 4
    %v936 = vsel %vm730, %v724, %v935
    %v938 = vunpack.c.l.s4 1983009808
    %v939 = vunpack.c.0.s8 %v938
    %v940 = vperm.slane %v934, %v939
    %v942 = vunpack.c.l.s4 1983009808
    %v943 = vunpack.c.0.s8 %v942
    %v944 = vperm.slane %v936, %v943
    %v945 = vrot.slane %v940, 4
    %v946 = vsel %vm730, %v945, %v928
    %v947 = vrot.slane %v928, 4
    %v948 = vsel %vm730, %v940, %v947
    %v950 = vunpack.c.l.s4 1934713408
    %v951 = vunpack.c.0.s8 %v950
    %v952 = vperm.slane %v946, %v951
    %v954 = vunpack.c.l.s4 1934713408
    %v955 = vunpack.c.0.s8 %v954
    %v956 = vperm.slane %v948, %v955
    %v957 = vrot.slane %v944, 4
    %v958 = vsel %vm730, %v957, %v932
    %v959 = vrot.slane %v932, 4
    %v960 = vsel %vm730, %v944, %v959
    %v962 = vunpack.c.l.s4 1934713408
    %v963 = vunpack.c.0.s8 %v962
    %v964 = vperm.slane %v958, %v963
    %v966 = vunpack.c.l.s4 1934713408
    %v967 = vunpack.c.0.s8 %v966
    %v968 = vperm.slane %v960, %v967
    %v969 = vrot.slane %v952, 4
    %v970 = vsel %vm730, 0.0, %v969
    %v971 = vrot.slane %v956, 4
    %v972 = vsel %vm730, 0.0, %v971
    %v973 = vrot.slane %v964, 4
    %v974 = vsel %vm730, 0.0, %v973
    %v975 = vrot.slane %v968, 4
    %v976 = vsel %vm730, 0.0, %v975
    %978 = vrot.lane.b32.xlu0 %v970, 16
    %v979 = vpop.permute.xlu0 %978
    %982 = vrot.lane.b32.xlu0 %v956, 32
    %v983 = vpop.permute.xlu0 %982
    %986 = vrot.lane.b32.xlu0 %v972, 48
    %v987 = vpop.permute.xlu0 %986
    %990 = vrot.lane.b32.xlu0 %v964, 64
    %v991 = vpop.permute.xlu0 %990
    %994 = vrot.lane.b32.xlu0 %v974, 80
    %v995 = vpop.permute.xlu0 %994
    %998 = vrot.lane.b32.xlu0 %v968, 96
    %v999 = vpop.permute.xlu0 %998
    %1002 = vrot.lane.b32.xlu0 %v976, 112
    %v1003 = vpop.permute.xlu0 %1002
    %v1005 = vsel %vm898, %v952, %v979
    %v1006 = vsel %vm900, %v1005, %v983
    %v1007 = vsel %vm902, %v1006, %v987
    %v1008 = vsel %vm904, %v1007, %v991
    %v1009 = vsel %vm906, %v1008, %v995
    %v1010 = vsel %vm908, %v1009, %v999
    %v1011 = vsel %vm910, %v1010, %v1003
    %v1013 = vrot.slane %v1011, 4
    %1015 = vst [vmem:[#allocation5] sm:$0xf0] %v1013
    %1016 = vst [vmem:[#allocation5 + $0x8] sm:$0xf0] %v1013
    %s1017 = scalar_lea.vmem [#allocation5], 16
    %1018 = vst [vmem:[%s1017] sm:$0xf] %v911
    %1019 = vst [vmem:[%s1017 + $0x8] sm:$0xf] %v918
    %1020 = vst [vmem:[%s1017] sm:$0xf0] %v1013
    %1021 = vst [vmem:[%s1017 + $0x8] sm:$0xf0] %v1013
    // Predicated region
    $region10: #{tpu_custom_call.1} parent=1 // pred_check
      _
    $region11: #{tpu_custom_call.1} parent=1 // pred_check_branch
      %1023 = sbr.rel (0) target = $region13
    $region12: #{tpu_custom_call.1} parent=1 // pred_region
      %1025 = vsyncadd [#allocation4], 0
      %s1026 = sshll.u32 [#allocation5], 4
      %s1027 = int_to_ptr.vmem [resolvable:$true] %s1026
      %s1028 = sshll.u32 %s1, 4
      %s1029 = int_to_ptr.hbm [resolvable:$true] %s1028
      %1034 = dma.vmem_to_hbm [thread:$0]  %s1027, 512, %s1029, [#allocation4], 256, 256, 16
    $region13: #{tpu_custom_call.1} parent=1 // pred_fallthru
      _
    // Predicated region
    $region14: #{tpu_custom_call.1} parent=1 // pred_check
      _
    $region15: #{tpu_custom_call.1} parent=1 // pred_check_branch
      %1036 = sbr.rel (0) target = $region17
    $region16: #{tpu_custom_call.1} parent=1 // pred_region
      %1038 = dma.done [#allocation4], 512
    $region17: #{tpu_custom_call.1} parent=1 // pred_fallthru
      _
    %1039 = vsyncpa [#allocation3], 1
    %1040 = vsyncpa [#allocation4], 1

</llo_original>
